<compile_context>
chip_gen: v6e
topology: v6e:2x2x1
jax: 0.10.0
libtpu: 0.0.40
codegen_flags: <defaults>
</compile_context>

<pallas_src>
import functools
import math

import jax
import jax.numpy as jnp
from jax import lax
from jax.experimental import pallas as pl
from jax.experimental.pallas import tpu as pltpu


def _label_smoothing_kernel(x_ref, y_ref, o_ref, *, smoothness, pad_idx, total_rows):
    x = x_ref[...].astype(jnp.float32)            # (tb, c) logits (upcast in VMEM)
    y = y_ref[...]                                # (tb, 1) int32 targets
    tb, c = x.shape

    # --- numerically-stable log-softmax pieces (full logp never materialized) ---
    m = jnp.max(x, axis=-1, keepdims=True)                            # (tb, 1)
    z = x - m
    lse = jnp.log(jnp.sum(jnp.exp(z), axis=-1, keepdims=True))        # (tb, 1)
    # rowsum(logp) = rowsum(z) - c * lse
    rowsum_logp = jnp.sum(z, axis=-1, keepdims=True) - jnp.float32(c) * lse

    # logp at the target column: one compare + select + row-reduce.
    col = lax.broadcasted_iota(jnp.int32, (tb, c), 1)
    z_at_y = jnp.sum(jnp.where(col == y, z, 0.0), axis=-1, keepdims=True)
    logp_y = z_at_y - lse                                             # (tb, 1)

    # logp at the pad column: static lane slice.
    logp_pad = z[:, pad_idx:pad_idx + 1] - lse                        # (tb, 1)

    # --- closed form of KLDiv(reduction='sum') for a non-pad row ---
    certain = 1.0 - smoothness
    smooth_val = smoothness / (c - 2)
    const_row = 0.0                      # sum_j t*log(t) is a compile-time constant
    if certain > 0.0:
        const_row += certain * math.log(certain)
    if smooth_val > 0.0:
        const_row += (c - 2) * smooth_val * math.log(smooth_val)

    loss_row = (jnp.float32(const_row)
                - jnp.float32(certain) * logp_y
                - jnp.float32(smooth_val) * (rowsum_logp - logp_y - logp_pad))

    # --- zero pad-target rows and out-of-range rows of a partial last tile ---
    i = pl.program_id(0)
    row = lax.broadcasted_iota(jnp.int32, (tb, 1), 0)
    in_range = (i * tb + row) < total_rows
    valid = jnp.logical_and(in_range, y != pad_idx)
    o_ref[...] = jnp.where(valid, loss_row, 0.0)


def label_smoothing_loss(x, y, smoothness=0.1, pad_idx=0, *, tile_b=None):
    """x: (b, c) logits (any float dtype); y: (b,) int targets. Returns f32 scalar."""
    b, c = x.shape
    assert c > 2, "label smoothing requires num_classes > 2"
    y2 = y.reshape(b, 1).astype(jnp.int32)

    if tile_b is None:
        # Size the double-buffered input tile to stay well inside the v7x VMEM
        # budget (64 MiB physical / TC) while leaving room for the f32 working set.
        per_buf_budget = 6 * 1024 * 1024
        max_rows = max(8, per_buf_budget // (c * x.dtype.itemsize))
        tile_b = min(b, max_rows, 256)
    if tile_b < b:
        tile_b = max(8, (tile_b // 8) * 8)     # (8, 128)-friendly sub-block
    else:
        tile_b = b                             # single full block
    num_tiles = pl.cdiv(b, tile_b)

    # TODO(synk): for very large vocabularies (>=64k classes) also tile the class
    # dimension with an online (running max / sum-exp) log-softmax.

    kernel = functools.partial(
        _label_smoothing_kernel,
        smoothness=float(smoothness),
        pad_idx=int(pad_idx),
        total_rows=b,
    )

    per_row = pl.pallas_call(
        kernel,
        out_shape=jax.ShapeDtypeStruct((b, 1), jnp.float32),
        grid_spec=pltpu.PrefetchScalarGridSpec(
            num_scalar_prefetch=0,
            grid=(num_tiles,),
            in_specs=[
                pl.BlockSpec((tile_b, c), lambda i: (i, 0)),
                pl.BlockSpec((tile_b, 1), lambda i: (i, 0)),
            ],
            out_specs=pl.BlockSpec((tile_b, 1), lambda i: (i, 0)),
        ),
        compiler_params=pltpu.CompilerParams(
            dimension_semantics=("parallel",),
            vmem_limit_bytes=48 * 1024 * 1024,
        ),
    )(x, y2)                                   # native dtype in HBM; upcast in kernel
    return jnp.sum(per_row)


def _reference(x, y, smoothness=0.1, pad_idx=0):
    x = x.astype(jnp.float32)
    b, c = x.shape
    logp = jax.nn.log_softmax(x, axis=-1)
    certain = 1.0 - smoothness
    smooth_val = smoothness / (c - 2)
    col = jnp.arange(c)[None, :]
    t = jnp.where(col == y[:, None], certain, smooth_val)
    t = jnp.where(col == pad_idx, 0.0, t)
    t = jnp.where(y[:, None] == pad_idx, 0.0, t)
    t_log_t = jnp.where(t > 0, t * jnp.log(jnp.where(t > 0, t, 1.0)), 0.0)
    return jnp.sum(t_log_t - t * logp)


if __name__ == "__main__":
    key = jax.random.PRNGKey(0)

    # --- test 1: small f32, single tile, with a pad-target row ---
    kx, ky, key = (*jax.random.split(key, 2), key)
    b, c = 8, 32
    x = jax.random.normal(kx, (b, c), dtype=jnp.float32)
    y = jax.random.randint(ky, (b,), 0, c, dtype=jnp.int32)
    y = y.at[0].set(0)                      # exercise the pad-row zeroing path
    loss = label_smoothing_loss(x, y, smoothness=0.1, pad_idx=0)
    jax.block_until_ready(loss)
    ref = _reference(x, y, smoothness=0.1, pad_idx=0)
    assert jnp.allclose(loss, ref, rtol=1e-4, atol=1e-4), (loss, ref)

    # --- test 2: bf16 input, multiple tiles with a partial last tile ---
    kx2, ky2 = jax.random.split(key)
    b2, c2 = 20, 128
    x2 = jax.random.normal(kx2, (b2, c2), dtype=jnp.float32).astype(jnp.bfloat16)
    y2 = jax.random.randint(ky2, (b2,), 0, c2, dtype=jnp.int32)
    y2 = y2.at[3].set(0)
    loss2 = label_smoothing_loss(x2, y2, smoothness=0.1, pad_idx=0, tile_b=8)
    jax.block_until_ready(loss2)
    ref2 = _reference(x2, y2, smoothness=0.1, pad_idx=0)
    assert jnp.allclose(loss2, ref2, rtol=1e-3, atol=1e-3), (loss2, ref2)

    print("KERNEL_OK")
</pallas_src>

<mosaic_0001>
module attributes {stable_mosaic.version = 11 : i64} {
  func.func @_label_smoothing_kernel(%arg0: i32, %arg1: memref<8x32xf32, #tpu.memory_space<vmem>>, %arg2: memref<8x1xi32, #tpu.memory_space<vmem>>, %arg3: memref<8x1xf32, #tpu.memory_space<vmem>>) attributes {dimension_semantics = [#tpu.dimension_semantics<parallel>], iteration_bounds = array<i64: 1>, scalar_prefetch = 0 : i64, scratch_operands = 0 : i64, tpu.core_type = #tpu.core_type<tc>, window_params = [{transform_indices = @transform_0, window_bounds = array<i64: 8, 32>}, {transform_indices = @transform_1, window_bounds = array<i64: 8, 1>}, {transform_indices = @transform_2, window_bounds = array<i64: 8, 1>}]} {
    %c0 = arith.constant 0 : index
    %c0_0 = arith.constant 0 : index
    %0 = vector.load %arg1[%c0, %c0_0] : memref<8x32xf32, #tpu.memory_space<vmem>>, vector<8x32xf32>
    %c0_1 = arith.constant 0 : index
    %c0_2 = arith.constant 0 : index
    %1 = vector.load %arg2[%c0_1, %c0_2] : memref<8x1xi32, #tpu.memory_space<vmem>>, vector<8x1xi32>
    %cst = arith.constant dense<0xFF800000> : vector<8xf32>
    %2 = vector.multi_reduction <maximumf>, %0, %cst [1] : vector<8x32xf32> to vector<8xf32>
    %3 = vector.shape_cast %2 : vector<8xf32> to vector<8x1xf32>
    %4 = vector.broadcast %3 : vector<8x1xf32> to vector<8x32xf32>
    %5 = arith.subf %0, %4 : vector<8x32xf32>
    %6 = math.exp %5 : vector<8x32xf32>
    %cst_3 = arith.constant dense<0.000000e+00> : vector<8xf32>
    %7 = vector.multi_reduction <add>, %6, %cst_3 [1] : vector<8x32xf32> to vector<8xf32>
    %8 = vector.shape_cast %7 : vector<8xf32> to vector<8x1xf32>
    %9 = math.log %8 : vector<8x1xf32>
    %cst_4 = arith.constant dense<0.000000e+00> : vector<8xf32>
    %10 = vector.multi_reduction <add>, %5, %cst_4 [1] : vector<8x32xf32> to vector<8xf32>
    %11 = vector.shape_cast %10 : vector<8xf32> to vector<8x1xf32>
    %cst_5 = arith.constant 3.200000e+01 : f32
    %12 = vector.broadcast %cst_5 : f32 to vector<8x1xf32>
    %13 = arith.mulf %12, %9 : vector<8x1xf32>
    %14 = arith.subf %11, %13 : vector<8x1xf32>
    %15 = tpu.iota {dimensions = array<i32: 1>} : vector<8x32xi32>
    %16 = vector.broadcast %1 : vector<8x1xi32> to vector<8x32xi32>
    %17 = arith.cmpi eq, %15, %16 : vector<8x32xi32>
    %cst_6 = arith.constant 0.000000e+00 : f32
    %18 = vector.broadcast %cst_6 : f32 to vector<8x32xf32>
    %19 = arith.select %17, %5, %18 : vector<8x32xi1>, vector<8x32xf32>
    %cst_7 = arith.constant dense<0.000000e+00> : vector<8xf32>
    %20 = vector.multi_reduction <add>, %19, %cst_7 [1] : vector<8x32xf32> to vector<8xf32>
    %21 = vector.shape_cast %20 : vector<8xf32> to vector<8x1xf32>
    %22 = arith.subf %21, %9 : vector<8x1xf32>
    %23 = vector.extract_strided_slice %5 {offsets = [0, 0], sizes = [8, 1], strides = [1, 1]} : vector<8x32xf32> to vector<8x1xf32>
    %24 = arith.subf %23, %9 : vector<8x1xf32>
    %cst_8 = arith.constant 0.899999976 : f32
    %25 = vector.broadcast %cst_8 : f32 to vector<8x1xf32>
    %26 = arith.mulf %25, %22 : vector<8x1xf32>
    %cst_9 = arith.constant -0.665202737 : f32
    %27 = vector.broadcast %cst_9 : f32 to vector<8x1xf32>
    %28 = arith.subf %27, %26 : vector<8x1xf32>
    %29 = arith.subf %14, %22 : vector<8x1xf32>
    %30 = arith.subf %29, %24 : vector<8x1xf32>
    %cst_10 = arith.constant 0.00333333341 : f32
    %31 = vector.broadcast %cst_10 : f32 to vector<8x1xf32>
    %32 = arith.mulf %31, %30 : vector<8x1xf32>
    %33 = arith.subf %28, %32 : vector<8x1xf32>
    %34 = tpu.iota {dimensions = array<i32: 0>} : vector<8x1xi32>
    %c8_i32 = arith.constant 8 : i32
    %35 = arith.muli %arg0, %c8_i32 : i32
    %36 = vector.broadcast %35 : i32 to vector<8x1xi32>
    %37 = arith.addi %36, %34 : vector<8x1xi32>
    %c8_i32_11 = arith.constant 8 : i32
    %38 = vector.broadcast %c8_i32_11 : i32 to vector<8x1xi32>
    %39 = arith.cmpi slt, %37, %38 : vector<8x1xi32>
    %c0_i32 = arith.constant 0 : i32
    %40 = vector.broadcast %c0_i32 : i32 to vector<8x1xi32>
    %41 = arith.cmpi ne, %1, %40 : vector<8x1xi32>
    %42 = arith.andi %39, %41 : vector<8x1xi1>
    %cst_12 = arith.constant 0.000000e+00 : f32
    %43 = vector.broadcast %cst_12 : f32 to vector<8x1xf32>
    %44 = arith.select %42, %33, %43 : vector<8x1xi1>, vector<8x1xf32>
    %c0_13 = arith.constant 0 : index
    %c0_14 = arith.constant 0 : index
    %45 = vector.load %arg3[%c0_13, %c0_14] : memref<8x1xf32, #tpu.memory_space<vmem>>, vector<8x1xf32>
    tpu.vector_store %arg3[%c0_13, %c0_14], %44 {strides = array<i32>} : memref<8x1xf32, #tpu.memory_space<vmem>>, vector<8x1xf32>,
    return
  }
  func.func @transform_0(%arg0: i32) -> (i32, i32) {
    %c0_i32 = arith.constant 0 : i32
    %c0_i32_0 = arith.constant 0 : i32
    return %arg0, %c0_i32 : i32, i32
  }
  func.func @transform_1(%arg0: i32) -> (i32, i32) {
    %c0_i32 = arith.constant 0 : i32
    %c0_i32_0 = arith.constant 0 : i32
    return %arg0, %c0_i32 : i32, i32
  }
  func.func @transform_2(%arg0: i32) -> (i32, i32) {
    %c0_i32 = arith.constant 0 : i32
    %c0_i32_0 = arith.constant 0 : i32
    return %arg0, %c0_i32 : i32, i32
  }
}

</mosaic_0001>

<llo_original>
// kernel: tpu_custom_call.1
$region0: #{tpu_custom_call.1}
  #allocation0 [shape = 'u32[]', space=smem, size = 0x4, offset = 0x4, fixed_abs, tag = 'smem constant byte address 0x4 - core index']
  #allocation1 [shape = 'u32[144,128]{1,0:T(1,128)}', space=vmem, size = 0x12000, scoped, tag = 'internal scratch']
  %s0 = inlined_call_operand.vmem [shape: f32[8,32], index: 0, kind: input, shape index: {}]
  %s1 = inlined_call_operand.vmem [shape: s32[8,1], index: 1, kind: input, shape index: {}]
  %s2 = inlined_call_operand.vmem [shape: f32[8,1], index: 2, kind: output, shape index: {}]
  %s3 = sld [smem:[#allocation0]]
  $region18: #{tpu_custom_call.1} parent=0
    _
  %s5 = ssub.s32 1, %s3
  %s6 = scalar_select 0, %s5, %s3
  // Predicated region
  $region2: #{tpu_custom_call.1} parent=0 // pred_check
    _
  $region3: #{tpu_custom_call.1} parent=0 // pred_check_branch
    %8 = sbr.rel (0) target = $region5
  $region4: #{tpu_custom_call.1} parent=0 // pred_region
    _
  $region5: #{tpu_custom_call.1} parent=0 // pred_fallthru
    _
  // Predicated region
  $region6: #{tpu_custom_call.1} parent=0 // pred_check
    _
  $region7: #{tpu_custom_call.1} parent=0 // pred_check_branch
    %10 = sbr.rel (0) target = $region9
  $region8: #{tpu_custom_call.1} parent=0 // pred_region
    _
  $region9: #{tpu_custom_call.1} parent=0 // pred_fallthru
    _
  %v11 = vld [vmem:[%s0] sm:$0xff]
  %v12 = vld [vmem:[%s1] sm:$0xff]
  %vm13 = vcmask 261120
  %v14 = vsel %vm13, %v11, -inf
  %15 = vmax.xlane.f32.xlu0 %v14
  %v16 = vpop.xlane.xlu0 %15
  %v17 = vsub.f32 %v11, %v16
  %v18 = vmul.f32 %v17, 1.442695
  %v19 = vpow.pop %v18
  %v20 = vsel %vm13, %v19, 0.0
  %21 = vadd.xlane.f32.xlu0 %v20
  %v22 = vpop.xlane.xlu0 %21
  %v23 = vlog2.pop %v22
  %v24 = vmul.f32 %v23, 0.6931472
  %v25 = vsel %vm13, %v17, 0.0
  %26 = vadd.xlane.f32.xlu0 %v25
  %v27 = vpop.xlane.xlu0 %26
  %v28 = vmul.f32 %v24, 32.0
  %v29 = vsub.f32 %v27, %v28
  %v30 = vlaneseq
  %v31 = vand.u32 %v30, 127
  %32 = vset.pattern.permute.xlu0 0
  %33 = vperm.xlu0 %32, %v12
  %v34 = vpop.permute.xlu0 %33
  %vm35 = vcmp.eq.s32.totalorder %v31, %v34
  %v36 = vsel %vm35, %v17, 0.0
  %v37 = vsel %vm13, %v36, 0.0
  %38 = vadd.xlane.f32.xlu0 %v37
  %v39 = vpop.xlane.xlu0 %38
  %v40 = vsub.f32 %v39, %v24
  %v41 = vsub.f32 %v17, %v24
  %v42 = vmul.f32 %v40, 0.9
  %v43 = vsub.f32 -0.66520274, %v42
  %v44 = vsub.f32 %v29, %v40
  %v45 = vsub.f32 %v44, %v41
  %v46 = vmul.f32 %v45, 0.0033333334
  %v47 = vsub.f32 %v43, %v46
  %v48 = vlaneseq
  %v49 = vshrl.u32 %v48, 7
  %s50 = smul.u32 0, 8
  %v51 = vstv %s50
  %v52 = vadd.s32 %v51, %v49
  %vm53 = vcmp.lt.s32.totalorder %v52, 8
  %vm54 = vcmp.ne.s32.totalorder %v12, 0
  %vm55 = vmand %vm53, %vm54
  %v56 = vsel %vm55, %v47, 0.0
  %vm57 = vcmask 7168
  %58 = vst.msk [vmem:[%s2] sm:$0xff] %vm57, %v56
  // Predicated region
  $region10: #{tpu_custom_call.1} parent=0 // pred_check
    _
  $region11: #{tpu_custom_call.1} parent=0 // pred_check_branch
    %60 = sbr.rel (0) target = $region13
  $region12: #{tpu_custom_call.1} parent=0 // pred_region
    _
  $region13: #{tpu_custom_call.1} parent=0 // pred_fallthru
    _
  // Predicated region
  $region14: #{tpu_custom_call.1} parent=0 // pred_check
    _
  $region15: #{tpu_custom_call.1} parent=0 // pred_check_branch
    %62 = sbr.rel (0) target = $region17
  $region16: #{tpu_custom_call.1} parent=0 // pred_region
    _
  $region17: #{tpu_custom_call.1} parent=0 // pred_fallthru
    _

</llo_original>
